<compile_context>
chip_gen: v6e
topology: v6e:2x2x1
jax: 0.10.0
libtpu: 0.0.40
codegen_flags: <defaults>
</compile_context>

<pallas_src>
import functools
import math

import jax
import jax.numpy as jnp
from jax import lax
from jax.experimental import pallas as pl
from jax.experimental.pallas import tpu as pltpu


def _pick_tile(n: int, pref: int) -> int:
    """Largest tile <= pref that divides n (multiple of 8 preferred)."""
    if n <= pref:
        return n
    t = pref
    while t >= 8:
        if n % t == 0:
            return t
        t -= 8
    return n


def _est_double_buffered_bytes(shapes_dtypes):
    return sum(2 * math.prod(s) * jnp.dtype(d).itemsize for s, d in shapes_dtypes)


# ---------------------------------------------------------------------------
# Kernel 1: QKV projection -> three separate (tm, H) outputs.
# ---------------------------------------------------------------------------
def _qkv_proj_kernel(x_ref, wq_ref, wk_ref, wv_ref, q_ref, k_ref, v_ref, *,
                     compute_dtype):
    # x stays f32 in HBM (one read); cast to the MXU operand dtype in-register.
    x = x_ref[...].astype(compute_dtype)
    q_ref[...] = jnp.dot(x, wq_ref[...],
                         preferred_element_type=jnp.float32).astype(q_ref.dtype)
    k_ref[...] = jnp.dot(x, wk_ref[...],
                         preferred_element_type=jnp.float32).astype(k_ref.dtype)
    v_ref[...] = jnp.dot(x, wv_ref[...],
                         preferred_element_type=jnp.float32).astype(v_ref.dtype)


# ---------------------------------------------------------------------------
# Kernel 2: flash-style causal attention with online softmax.
# ---------------------------------------------------------------------------
def _flash_attn_kernel(q_ref, k_ref, v_ref, o_ref, m_sc, l_sc, acc_sc, *,
                       tq, tk, exp_dtype):
    qi = pl.program_id(1)
    ki = pl.program_id(2)
    q_start = qi * tq
    kv_start = ki * tk

    @pl.when(ki == 0)
    def _init():
        m_sc[...] = jnp.full(m_sc.shape, -1e30, dtype=m_sc.dtype)
        l_sc[...] = jnp.zeros(l_sc.shape, dtype=l_sc.dtype)
        acc_sc[...] = jnp.zeros(acc_sc.shape, dtype=acc_sc.dtype)

    def _scores():
        # q is pre-scaled by 1/sqrt(H) (folded into wq); contract over H
        # without materializing a transpose of k.
        return lax.dot_general(q_ref[0], k_ref[0], (((1,), (1,)), ((), ())),
                               preferred_element_type=jnp.float32)   # (tq, tk)

    def _update(s):
        # Online-softmax update; running state strictly f32.
        # (The kv loop always starts at ki == 0, whose tile contains the
        #  always-unmasked column 0, so m is finite before any later tile —
        #  no all-masked-row hazard.)
        m_prev = m_sc[...]                                           # (tq, 1)
        m_new = jnp.maximum(m_prev, jnp.max(s, axis=-1, keepdims=True))
        alpha = jnp.exp(m_prev - m_new)                              # (tq, 1) f32
        # exp over the (tq, tk) tile is the EUP hot spot -> bf16 on v6e/v7x.
        p = jnp.exp((s - m_new).astype(exp_dtype))                   # (tq, tk)
        l_sc[...] = alpha * l_sc[...] + jnp.sum(p, axis=-1, keepdims=True,
                                                dtype=jnp.float32)
        acc_sc[...] = alpha * acc_sc[...] + jnp.dot(
            p.astype(v_ref.dtype), v_ref[0],
            preferred_element_type=jnp.float32)                      # (tq, H)
        m_sc[...] = m_new

    # Tiles strictly below the diagonal: mask-free path (no iota/compare/select).
    @pl.when(kv_start + tk - 1 <= q_start)
    def _below_diag():
        _update(_scores())

    # Diagonal-straddling tiles: finite -1e30 bias (no exp(-inf) NaN hazard).
    # Range test (not ki == qi) so tq != tk stays correct.
    @pl.when(jnp.logical_and(kv_start + tk - 1 > q_start,
                             kv_start <= q_start + tq - 1))
    def _on_diag():
        s = _scores()
        row = q_start + lax.broadcasted_iota(jnp.int32, (tq, tk), 0)
        col = kv_start + lax.broadcasted_iota(jnp.int32, (tq, tk), 1)
        _update(jnp.where(col > row, -1e30, s))

    # Tiles fully above the diagonal do nothing; their k/v index_map is clamped
    # in the wrapper so no DMA is issued for them either.

    @pl.when(ki == pl.num_programs(2) - 1)
    def _finalize():
        # Exact reciprocal: runs once per q tile on (tq, H); approx gave nothing.
        o_ref[0] = (acc_sc[...] / l_sc[...]).astype(o_ref.dtype)


# ---------------------------------------------------------------------------
# Wrapper
# ---------------------------------------------------------------------------
def causal_self_attention(x, wq, wk, wv, *, compute_dtype=jnp.bfloat16,
                          exp_dtype=None, q_tile=256, kv_tile=256, m_tile=512):
    """x: (B, T, C). wq/wk/wv: (C, H) (pre-transposed nn.Linear weights).

    Returns (B, T, H). `compute_dtype` sets the MXU operand dtype (bf16 default
    — the MXU is bf16-native on every generation; softmax state / accumulation
    stay f32). `exp_dtype` defaults to bf16 when compute_dtype is bf16
    (v6e/v7x EUP fast path); pass jnp.float32 on v5e or for tighter parity.
    """
    B, T, C = x.shape
    H = wq.shape[1]
    sm_scale = 1.0 / math.sqrt(H)

    if exp_dtype is None:
        exp_dtype = (jnp.bfloat16 if jnp.dtype(compute_dtype) == jnp.dtype(jnp.bfloat16)
                     else jnp.float32)

    # Fold the softmax scale into the q weight (one-time, constant-foldable).
    wq_s = (wq * sm_scale).astype(compute_dtype)
    wk_c = wk.astype(compute_dtype)
    wv_c = wv.astype(compute_dtype)

    # ---- kernel 1: QKV projection over M = B*T rows ----
    x2d = x.reshape(B * T, C)
    M = B * T
    tm = _pick_tile(M, m_tile)

    k1_est = _est_double_buffered_bytes(
        [((tm, C), x.dtype), ((C, H), compute_dtype), ((C, H), compute_dtype),
         ((C, H), compute_dtype)] + [((tm, H), compute_dtype)] * 3)
    k1_vmem = None if k1_est < 12 * 2**20 else int(min(48 * 2**20, 4 * k1_est))

    # TODO(synk): on v7x the grid-invariant weight blocks could be single-buffered
    # (pipeline_mode=pl.Buffered(1)); kept default-buffered here for portability.
    qkv_out = jax.ShapeDtypeStruct((M, H), compute_dtype)
    q2d, k2d, v2d = pl.pallas_call(
        functools.partial(_qkv_proj_kernel, compute_dtype=compute_dtype),
        out_shape=(qkv_out, qkv_out, qkv_out),
        grid_spec=pltpu.PrefetchScalarGridSpec(
            num_scalar_prefetch=0,
            grid=(M // tm,),
            in_specs=[
                pl.BlockSpec((tm, C), lambda i: (i, 0)),
                pl.BlockSpec((C, H), lambda i: (0, 0)),
                pl.BlockSpec((C, H), lambda i: (0, 0)),
                pl.BlockSpec((C, H), lambda i: (0, 0)),
            ],
            out_specs=[
                pl.BlockSpec((tm, H), lambda i: (i, 0)),
                pl.BlockSpec((tm, H), lambda i: (i, 0)),
                pl.BlockSpec((tm, H), lambda i: (i, 0)),
            ],
        ),
        compiler_params=pltpu.CompilerParams(
            dimension_semantics=("parallel",),
            vmem_limit_bytes=k1_vmem),
    )(x2d, wq_s, wk_c, wv_c)

    # Contiguous row-major reshapes — no HBM copy (unlike the old lane slice).
    q = q2d.reshape(B, T, H)
    k = k2d.reshape(B, T, H)
    v = v2d.reshape(B, T, H)

    # ---- kernel 2: flash attention, grid (B, q tiles, kv tiles) ----
    tq = _pick_tile(T, q_tile)
    tk = _pick_tile(T, kv_tile)

    def _q_map(b, qi, ki):
        return (b, qi, 0)

    def _kv_map(b, qi, ki):
        # Clamp to the last kv tile any row of this q tile can attend to, so
        # fully-above-diagonal (skipped) steps keep the same block index and
        # issue no DMA.
        last = (qi * tq + tq - 1) // tk
        return (b, jnp.minimum(ki, last), 0)

    k2_est = (_est_double_buffered_bytes(
        [((1, tq, H), compute_dtype), ((1, tk, H), compute_dtype),
         ((1, tk, H), compute_dtype), ((1, tq, H), x.dtype)])
        + 2 * tq * 4 + tq * H * 4)
    k2_vmem = None if k2_est < 12 * 2**20 else int(min(48 * 2**20, 4 * k2_est))

    out = pl.pallas_call(
        functools.partial(_flash_attn_kernel, tq=tq, tk=tk, exp_dtype=exp_dtype),
        out_shape=jax.ShapeDtypeStruct((B, T, H), x.dtype),
        grid_spec=pltpu.PrefetchScalarGridSpec(
            num_scalar_prefetch=0,
            grid=(B, T // tq, T // tk),
            in_specs=[
                pl.BlockSpec((1, tq, H), _q_map),
                pl.BlockSpec((1, tk, H), _kv_map),
                pl.BlockSpec((1, tk, H), _kv_map),
            ],
            out_specs=pl.BlockSpec((1, tq, H), _q_map),
            scratch_shapes=[
                pltpu.VMEM((tq, 1), jnp.float32),   # running max m
                pltpu.VMEM((tq, 1), jnp.float32),   # running sum l
                pltpu.VMEM((tq, H), jnp.float32),   # output accumulator
            ],
        ),
        compiler_params=pltpu.CompilerParams(
            # Batch first so megacore / v7x's 2 TCs split whole batch entries
            # (balanced against the causal-triangle workload skew over qi).
            dimension_semantics=("parallel", "parallel", "arbitrary"),
            vmem_limit_bytes=k2_vmem),
    )(q, k, v)
    return out


def reference(x, wq, wk, wv):
    """Pure-JAX reference mirroring the PyTorch forward."""
    H = wq.shape[1]
    q = x @ wq
    k = x @ wk
    v = x @ wv
    w = (q @ jnp.swapaxes(k, -2, -1)) / (H ** 0.5)
    T = x.shape[1]
    mask = jnp.triu(jnp.ones((T, T), dtype=bool), k=1)
    w = jnp.where(mask, -jnp.inf, w)
    w = jax.nn.softmax(w, axis=-1)
    return w @ v


if __name__ == "__main__":
    # Module hyperparameters (small, consistent with the forward):
    max_context_size = 8
    embed_size = 32
    head_size = 16
    B, T = 2, max_context_size

    key = jax.random.PRNGKey(0)
    kx, kq, kk, kv = jax.random.split(key, 4)

    x = jax.random.normal(kx, (B, T, embed_size), dtype=jnp.float32)
    scale = 1.0 / math.sqrt(embed_size)
    wq = jax.random.uniform(kq, (embed_size, head_size), jnp.float32, -scale, scale)
    wk = jax.random.uniform(kk, (embed_size, head_size), jnp.float32, -scale, scale)
    wv = jax.random.uniform(kv, (embed_size, head_size), jnp.float32, -scale, scale)

    ref = reference(x, wq, wk, wv)

    # f32 MXU operands + f32 exp: tight parity path.
    out_f32 = jax.block_until_ready(
        causal_self_attention(x, wq, wk, wv, compute_dtype=jnp.float32,
                              exp_dtype=jnp.float32))
    assert out_f32.shape == (B, T, head_size)
    assert jnp.allclose(out_f32, ref, atol=2e-3, rtol=2e-3), (
        float(jnp.max(jnp.abs(out_f32 - ref))))

    # Default fast path: bf16 MXU operands + bf16 exp, f32 softmax state/accum.
    out_bf16 = jax.block_until_ready(causal_self_attention(x, wq, wk, wv))
    assert out_bf16.shape == (B, T, head_size)
    assert jnp.allclose(out_bf16, ref, atol=3e-2, rtol=3e-2), (
        float(jnp.max(jnp.abs(out_bf16 - ref))))

    print("KERNEL_OK")
</pallas_src>

<mosaic_0001>
module attributes {stable_mosaic.version = 11 : i64} {
  func.func @_qkv_proj_kernel(%arg0: i32, %arg1: memref<16x32xf32, #tpu.memory_space<vmem>>, %arg2: memref<32x16xf32, #tpu.memory_space<vmem>>, %arg3: memref<32x16xf32, #tpu.memory_space<vmem>>, %arg4: memref<32x16xf32, #tpu.memory_space<vmem>>, %arg5: memref<16x16xf32, #tpu.memory_space<vmem>>, %arg6: memref<16x16xf32, #tpu.memory_space<vmem>>, %arg7: memref<16x16xf32, #tpu.memory_space<vmem>>) attributes {dimension_semantics = [#tpu.dimension_semantics<parallel>], iteration_bounds = array<i64: 1>, scalar_prefetch = 0 : i64, scratch_operands = 0 : i64, tpu.core_type = #tpu.core_type<tc>, window_params = [{transform_indices = @transform_0, window_bounds = array<i64: 16, 32>}, {pipeline_mode = #tpu.pipeline_mode<synchronous>, transform_indices = @transform_1, window_bounds = array<i64: 32, 16>}, {pipeline_mode = #tpu.pipeline_mode<synchronous>, transform_indices = @transform_2, window_bounds = array<i64: 32, 16>}, {pipeline_mode = #tpu.pipeline_mode<synchronous>, transform_indices = @transform_3, window_bounds = array<i64: 32, 16>}, {transform_indices = @transform_4, window_bounds = array<i64: 16, 16>}, {transform_indices = @transform_5, window_bounds = array<i64: 16, 16>}, {transform_indices = @transform_6, window_bounds = array<i64: 16, 16>}]} {
    %c0 = arith.constant 0 : index
    %c0_0 = arith.constant 0 : index
    %0 = vector.load %arg1[%c0, %c0_0] : memref<16x32xf32, #tpu.memory_space<vmem>>, vector<16x32xf32>
    %c0_1 = arith.constant 0 : index
    %c0_2 = arith.constant 0 : index
    %1 = vector.load %arg2[%c0_1, %c0_2] : memref<32x16xf32, #tpu.memory_space<vmem>>, vector<32x16xf32>
    %cst = arith.constant dense<0.000000e+00> : vector<16x16xf32>
    %2 = tpu.matmul %0, %1, %cst {dimension_numbers = #tpu.dot_dimension_numbers<[1], [0], [0], [1], [0, 0, 1, 1], [], []>} : vector<16x32xf32>, vector<32x16xf32>, vector<16x16xf32> -> vector<16x16xf32>
    %c0_3 = arith.constant 0 : index
    %c0_4 = arith.constant 0 : index
    %3 = vector.load %arg5[%c0_3, %c0_4] : memref<16x16xf32, #tpu.memory_space<vmem>>, vector<16x16xf32>
    tpu.vector_store %arg5[%c0_3, %c0_4], %2 {strides = array<i32>} : memref<16x16xf32, #tpu.memory_space<vmem>>, vector<16x16xf32>,
    %c0_5 = arith.constant 0 : index
    %c0_6 = arith.constant 0 : index
    %4 = vector.load %arg3[%c0_5, %c0_6] : memref<32x16xf32, #tpu.memory_space<vmem>>, vector<32x16xf32>
    %cst_7 = arith.constant dense<0.000000e+00> : vector<16x16xf32>
    %5 = tpu.matmul %0, %4, %cst_7 {dimension_numbers = #tpu.dot_dimension_numbers<[1], [0], [0], [1], [0, 0, 1, 1], [], []>} : vector<16x32xf32>, vector<32x16xf32>, vector<16x16xf32> -> vector<16x16xf32>
    %c0_8 = arith.constant 0 : index
    %c0_9 = arith.constant 0 : index
    %6 = vector.load %arg6[%c0_8, %c0_9] : memref<16x16xf32, #tpu.memory_space<vmem>>, vector<16x16xf32>
    tpu.vector_store %arg6[%c0_8, %c0_9], %5 {strides = array<i32>} : memref<16x16xf32, #tpu.memory_space<vmem>>, vector<16x16xf32>,
    %c0_10 = arith.constant 0 : index
    %c0_11 = arith.constant 0 : index
    %7 = vector.load %arg4[%c0_10, %c0_11] : memref<32x16xf32, #tpu.memory_space<vmem>>, vector<32x16xf32>
    %cst_12 = arith.constant dense<0.000000e+00> : vector<16x16xf32>
    %8 = tpu.matmul %0, %7, %cst_12 {dimension_numbers = #tpu.dot_dimension_numbers<[1], [0], [0], [1], [0, 0, 1, 1], [], []>} : vector<16x32xf32>, vector<32x16xf32>, vector<16x16xf32> -> vector<16x16xf32>
    %c0_13 = arith.constant 0 : index
    %c0_14 = arith.constant 0 : index
    %9 = vector.load %arg7[%c0_13, %c0_14] : memref<16x16xf32, #tpu.memory_space<vmem>>, vector<16x16xf32>
    tpu.vector_store %arg7[%c0_13, %c0_14], %8 {strides = array<i32>} : memref<16x16xf32, #tpu.memory_space<vmem>>, vector<16x16xf32>,
    return
  }
  func.func @transform_0(%arg0: i32) -> (i32, i32) {
    %c0_i32 = arith.constant 0 : i32
    %c0_i32_0 = arith.constant 0 : i32
    return %arg0, %c0_i32 : i32, i32
  }
  func.func @transform_1(%arg0: i32) -> (i32, i32) {
    %c0_i32 = arith.constant 0 : i32
    %c0_i32_0 = arith.constant 0 : i32
    %c0_i32_1 = arith.constant 0 : i32
    return %c0_i32, %c0_i32_0 : i32, i32
  }
  func.func @transform_2(%arg0: i32) -> (i32, i32) {
    %c0_i32 = arith.constant 0 : i32
    %c0_i32_0 = arith.constant 0 : i32
    %c0_i32_1 = arith.constant 0 : i32
    return %c0_i32, %c0_i32_0 : i32, i32
  }
  func.func @transform_3(%arg0: i32) -> (i32, i32) {
    %c0_i32 = arith.constant 0 : i32
    %c0_i32_0 = arith.constant 0 : i32
    %c0_i32_1 = arith.constant 0 : i32
    return %c0_i32, %c0_i32_0 : i32, i32
  }
  func.func @transform_4(%arg0: i32) -> (i32, i32) {
    %c0_i32 = arith.constant 0 : i32
    %c0_i32_0 = arith.constant 0 : i32
    return %arg0, %c0_i32 : i32, i32
  }
  func.func @transform_5(%arg0: i32) -> (i32, i32) {
    %c0_i32 = arith.constant 0 : i32
    %c0_i32_0 = arith.constant 0 : i32
    return %arg0, %c0_i32 : i32, i32
  }
  func.func @transform_6(%arg0: i32) -> (i32, i32) {
    %c0_i32 = arith.constant 0 : i32
    %c0_i32_0 = arith.constant 0 : i32
    return %arg0, %c0_i32 : i32, i32
  }
}

</mosaic_0001>

<llo_original>
// kernel: tpu_custom_call.1
$region0: #{tpu_custom_call.1}
  #allocation0 [shape = 'u32[]', space=smem, size = 0x4, offset = 0x4, fixed_abs, tag = 'smem constant byte address 0x4 - core index']
  #allocation1 [shape = 'u32[144,128]{1,0:T(1,128)}', space=vmem, size = 0x12000, scoped, tag = 'internal scratch']
  %s0 = inlined_call_operand.vmem [shape: f32[16,32], index: 0, kind: input, shape index: {}]
  %s1 = inlined_call_operand.vmem [shape: f32[32,16], index: 1, kind: input, shape index: {}]
  %s2 = inlined_call_operand.vmem [shape: f32[32,16], index: 2, kind: input, shape index: {}]
  %s3 = inlined_call_operand.vmem [shape: f32[32,16], index: 3, kind: input, shape index: {}]
  %s4 = inlined_call_operand.hbm [shape: f32[16,16], index: 4, kind: output, shape index: {0}]
  %s5 = inlined_call_operand.hbm [shape: f32[16,16], index: 5, kind: output, shape index: {1}]
  %s6 = inlined_call_operand.hbm [shape: f32[16,16], index: 6, kind: output, shape index: {2}]
  %7 = xla_tuple %s4, %s5, %s6
  %s8 = sld [smem:[#allocation0]]
  $region42: #{tpu_custom_call.1} parent=0
    _
  %s10 = ssub.s32 1, %s8
  %s11 = scalar_select 0, %s10, %s8
  $region1: #{tpu_custom_call.1} parent=0
    #allocation2 [shape = 'u8[8192]{0}', space=vmem, size = 0x2000, scoped, tag = 'output window, operand 0, single buffered']
    #allocation3 [shape = 's32[1]{0}', space=sflag, size = 0x4, scoped, tag = 'scoped memory for tpu_custom_call.1']
    #allocation4 [shape = 'u8[8192]{0}', space=vmem, size = 0x2000, scoped, tag = 'output window, operand 1, single buffered']
    #allocation5 [shape = 's32[1]{0}', space=sflag, size = 0x4, scoped, tag = 'scoped memory for tpu_custom_call.1']
    #allocation6 [shape = 'u8[8192]{0}', space=vmem, size = 0x2000, scoped, tag = 'output window, operand 2, single buffered']
    %12 = vsyncpa [#allocation3], 0
    %13 = vsyncpa [#allocation5], 0
    // Predicated region
    $region2: #{tpu_custom_call.1} parent=1 // pred_check
      _
    $region3: #{tpu_custom_call.1} parent=1 // pred_check_branch
      %15 = sbr.rel (0) target = $region5
    $region4: #{tpu_custom_call.1} parent=1 // pred_region
      _
    $region5: #{tpu_custom_call.1} parent=1 // pred_fallthru
      _
    // Predicated region
    $region6: #{tpu_custom_call.1} parent=1 // pred_check
      _
    $region7: #{tpu_custom_call.1} parent=1 // pred_check_branch
      %17 = sbr.rel (0) target = $region9
    $region8: #{tpu_custom_call.1} parent=1 // pred_region
      _
    $region9: #{tpu_custom_call.1} parent=1 // pred_fallthru
      _
    // Predicated region
    $region10: #{tpu_custom_call.1} parent=1 // pred_check
      _
    $region11: #{tpu_custom_call.1} parent=1 // pred_check_branch
      %19 = sbr.rel (0) target = $region13
    $region12: #{tpu_custom_call.1} parent=1 // pred_region
      _
    $region13: #{tpu_custom_call.1} parent=1 // pred_fallthru
      _
    // Predicated region
    $region14: #{tpu_custom_call.1} parent=1 // pred_check
      _
    $region15: #{tpu_custom_call.1} parent=1 // pred_check_branch
      %21 = sbr.rel (0) target = $region17
    $region16: #{tpu_custom_call.1} parent=1 // pred_region
      _
    $region17: #{tpu_custom_call.1} parent=1 // pred_fallthru
      _
    %v22 = vld [vmem:[%s0] sm:$0xff]
    %v23 = vld [vmem:[%s0 + $0x8] sm:$0xff]
    %v24 = vld [vmem:[%s1] sm:$0xff]
    %v25 = vld [vmem:[%s1 + $0x8] sm:$0xff]
    %v26 = vld [vmem:[%s1 + $0x10] sm:$0xff]
    %v27 = vld [vmem:[%s1 + $0x18] sm:$0xff]
    %vm28 = vcmask 261120
    %v30 = vsel %vm28, %v22, 0
    %v33 = vsel %vm28, %v23, 0
    %35 = vmatprep.subr.mxu0 0.0
    %36 = vmatpush1.msra.mxu0 0.0
    %37 = vmatprep.subr.mxu0 0.0
    %38 = vmatpush1.msra.mxu0 0.0
    %39 = vmatprep.subr.mxu0 0.0
    %40 = vmatpush1.msra.mxu0 0.0
    %41 = vmatprep.subr.mxu0 0.0
    %42 = vmatpush1.msra.mxu0 0.0
    %43 = vmatprep.subr.mxu0 0.0
    %44 = vmatpush1.msra.mxu0 0.0
    %45 = vmatprep.subr.mxu0 0.0
    %46 = vmatpush1.msra.mxu0 0.0
    %47 = vmatprep.subr.mxu0 0.0
    %48 = vmatpush1.msra.mxu0 0.0
    %49 = vmatprep.subr.mxu0 0.0
    %50 = vmatpush1.msra.mxu0 0.0
    %51 = vmatprep.subr.mxu0 0.0
    %52 = vmatpush1.msra.mxu0 0.0
    %53 = vmatprep.subr.mxu0 0.0
    %54 = vmatpush1.msra.mxu0 0.0
    %55 = vmatprep.subr.mxu0 0.0
    %56 = vmatpush1.msra.mxu0 0.0
    %57 = vmatprep.subr.mxu0 0.0
    %58 = vmatpush1.msra.mxu0 0.0
    %59 = vmatprep.subr.mxu0 0.0
    %60 = vmatpush1.msra.mxu0 %v27
    %61 = vmatprep.subr.mxu0 0.0
    %62 = vmatpush1.msra.mxu0 %v26
    %63 = vmatprep.subr.mxu0 0.0
    %64 = vmatpush1.msra.mxu0 %v25
    %65 = vmatprep.subr.mxu0 0.0
    %66 = vmatpush1.msra.mxu0 %v24
    %67 = vmatprep.subr.mxu0 0.0
    %68 = vmatpush2.msra.mxu0 0.0
    %69 = vmatprep.subr.mxu0 0.0
    %70 = vmatpush2.msra.mxu0 0.0
    %71 = vmatprep.subr.mxu0 0.0
    %72 = vmatpush2.msra.mxu0 0.0
    %73 = vmatprep.subr.mxu0 0.0
    %74 = vmatpush2.msra.mxu0 0.0
    %75 = vmatprep.subr.mxu0 0.0
    %76 = vmatpush2.msra.mxu0 0.0
    %77 = vmatprep.subr.mxu0 0.0
    %78 = vmatpush2.msra.mxu0 0.0
    %79 = vmatprep.subr.mxu0 0.0
    %80 = vmatpush2.msra.mxu0 0.0
    %81 = vmatprep.subr.mxu0 0.0
    %82 = vmatpush2.msra.mxu0 0.0
    %83 = vmatprep.subr.mxu0 0.0
    %84 = vmatpush2.msra.mxu0 0.0
    %85 = vmatprep.subr.mxu0 0.0
    %86 = vmatpush2.msra.mxu0 0.0
    %87 = vmatprep.subr.mxu0 0.0
    %88 = vmatpush2.msra.mxu0 0.0
    %89 = vmatprep.subr.mxu0 0.0
    %90 = vmatpush2.msra.mxu0 0.0
    %91 = vmatprep.subr.mxu0 0.0
    %92 = vmatpush2.msra.mxu0 0.0
    %93 = vmatprep.subr.mxu0 0.0
    %94 = vmatpush2.msra.mxu0 0.0
    %95 = vmatprep.subr.mxu0 0.0
    %96 = vmatpush2.msra.mxu0 0.0
    %97 = vmatprep.subr.mxu0 0.0
    %98 = vmatpush2.msra.mxu0 0.0
    %99 = vmatprep.mubr.f32.mxu0 0.0
    %100 = vmatmul.mubr.f32.gmra.mxu0 %v30
    %v101 = vpop.f32.mrf.mxu0
    %v102 = vadd.f32 0.0, %v101
    %v103 = vpop.f32.mrf.mxu0
    %104 = vmatprep.mubr.f32.mxu0 0.0
    %105 = vmatmul.mubr.f32.gmra.mxu0 %v33
    %v106 = vpop.f32.mrf.mxu0
    %v107 = vadd.f32 0.0, %v106
    %v108 = vpop.f32.mrf.mxu0
    %109 = vdwg.mxu0
    %vm110 = vcmask 130048
    %111 = vst.msk [vmem:[#allocation2] sm:$0xff] %vm110, %v102
    %112 = vst.msk [vmem:[#allocation2 + $0x8] sm:$0xff] %vm110, %v107
    %v113 = vld [vmem:[%s2] sm:$0xff]
    %v114 = vld [vmem:[%s2 + $0x8] sm:$0xff]
    %v115 = vld [vmem:[%s2 + $0x10] sm:$0xff]
    %v116 = vld [vmem:[%s2 + $0x18] sm:$0xff]
    %117 = vmatprep.subr.mxu0 0.0
    %118 = vmatpush1.msra.mxu0 0.0
    %119 = vmatprep.subr.mxu0 0.0
    %120 = vmatpush1.msra.mxu0 0.0
    %121 = vmatprep.subr.mxu0 0.0
    %122 = vmatpush1.msra.mxu0 0.0
    %123 = vmatprep.subr.mxu0 0.0
    %124 = vmatpush1.msra.mxu0 0.0
    %125 = vmatprep.subr.mxu0 0.0
    %126 = vmatpush1.msra.mxu0 0.0
    %127 = vmatprep.subr.mxu0 0.0
    %128 = vmatpush1.msra.mxu0 0.0
    %129 = vmatprep.subr.mxu0 0.0
    %130 = vmatpush1.msra.mxu0 0.0
    %131 = vmatprep.subr.mxu0 0.0
    %132 = vmatpush1.msra.mxu0 0.0
    %133 = vmatprep.subr.mxu0 0.0
    %134 = vmatpush1.msra.mxu0 0.0
    %135 = vmatprep.subr.mxu0 0.0
    %136 = vmatpush1.msra.mxu0 0.0
    %137 = vmatprep.subr.mxu0 0.0
    %138 = vmatpush1.msra.mxu0 0.0
    %139 = vmatprep.subr.mxu0 0.0
    %140 = vmatpush1.msra.mxu0 0.0
    %141 = vmatprep.subr.mxu0 0.0
    %142 = vmatpush1.msra.mxu0 %v116
    %143 = vmatprep.subr.mxu0 0.0
    %144 = vmatpush1.msra.mxu0 %v115
    %145 = vmatprep.subr.mxu0 0.0
    %146 = vmatpush1.msra.mxu0 %v114
    %147 = vmatprep.subr.mxu0 0.0
    %148 = vmatpush1.msra.mxu0 %v113
    %149 = vmatprep.subr.mxu0 0.0
    %150 = vmatpush2.msra.mxu0 0.0
    %151 = vmatprep.subr.mxu0 0.0
    %152 = vmatpush2.msra.mxu0 0.0
    %153 = vmatprep.subr.mxu0 0.0
    %154 = vmatpush2.msra.mxu0 0.0
    %155 = vmatprep.subr.mxu0 0.0
    %156 = vmatpush2.msra.mxu0 0.0
    %157 = vmatprep.subr.mxu0 0.0
    %158 = vmatpush2.msra.mxu0 0.0
    %159 = vmatprep.subr.mxu0 0.0
    %160 = vmatpush2.msra.mxu0 0.0
    %161 = vmatprep.subr.mxu0 0.0
    %162 = vmatpush2.msra.mxu0 0.0
    %163 = vmatprep.subr.mxu0 0.0
    %164 = vmatpush2.msra.mxu0 0.0
    %165 = vmatprep.subr.mxu0 0.0
    %166 = vmatpush2.msra.mxu0 0.0
    %167 = vmatprep.subr.mxu0 0.0
    %168 = vmatpush2.msra.mxu0 0.0
    %169 = vmatprep.subr.mxu0 0.0
    %170 = vmatpush2.msra.mxu0 0.0
    %171 = vmatprep.subr.mxu0 0.0
    %172 = vmatpush2.msra.mxu0 0.0
    %173 = vmatprep.subr.mxu0 0.0
    %174 = vmatpush2.msra.mxu0 0.0
    %175 = vmatprep.subr.mxu0 0.0
    %176 = vmatpush2.msra.mxu0 0.0
    %177 = vmatprep.subr.mxu0 0.0
    %178 = vmatpush2.msra.mxu0 0.0
    %179 = vmatprep.subr.mxu0 0.0
    %180 = vmatpush2.msra.mxu0 0.0
    %181 = vmatprep.mubr.f32.mxu0 0.0
    %182 = vmatmul.mubr.f32.gmra.mxu0 %v30
    %v183 = vpop.f32.mrf.mxu0
    %v184 = vadd.f32 0.0, %v183
    %v185 = vpop.f32.mrf.mxu0
    %186 = vmatprep.mubr.f32.mxu0 0.0
    %187 = vmatmul.mubr.f32.gmra.mxu0 %v33
    %v188 = vpop.f32.mrf.mxu0
    %v189 = vadd.f32 0.0, %v188
    %v190 = vpop.f32.mrf.mxu0
    %191 = vdwg.mxu0
    %192 = vst.msk [vmem:[#allocation4] sm:$0xff] %vm110, %v184
    %193 = vst.msk [vmem:[#allocation4 + $0x8] sm:$0xff] %vm110, %v189
    %v194 = vld [vmem:[%s3] sm:$0xff]
    %v195 = vld [vmem:[%s3 + $0x8] sm:$0xff]
    %v196 = vld [vmem:[%s3 + $0x10] sm:$0xff]
    %v197 = vld [vmem:[%s3 + $0x18] sm:$0xff]
    %198 = vmatprep.subr.mxu0 0.0
    %199 = vmatpush1.msra.mxu0 0.0
    %200 = vmatprep.subr.mxu0 0.0
    %201 = vmatpush1.msra.mxu0 0.0
    %202 = vmatprep.subr.mxu0 0.0
    %203 = vmatpush1.msra.mxu0 0.0
    %204 = vmatprep.subr.mxu0 0.0
    %205 = vmatpush1.msra.mxu0 0.0
    %206 = vmatprep.subr.mxu0 0.0
    %207 = vmatpush1.msra.mxu0 0.0
    %208 = vmatprep.subr.mxu0 0.0
    %209 = vmatpush1.msra.mxu0 0.0
    %210 = vmatprep.subr.mxu0 0.0
    %211 = vmatpush1.msra.mxu0 0.0
    %212 = vmatprep.subr.mxu0 0.0
    %213 = vmatpush1.msra.mxu0 0.0
    %214 = vmatprep.subr.mxu0 0.0
    %215 = vmatpush1.msra.mxu0 0.0
    %216 = vmatprep.subr.mxu0 0.0
    %217 = vmatpush1.msra.mxu0 0.0
    %218 = vmatprep.subr.mxu0 0.0
    %219 = vmatpush1.msra.mxu0 0.0
    %220 = vmatprep.subr.mxu0 0.0
    %221 = vmatpush1.msra.mxu0 0.0
    %222 = vmatprep.subr.mxu0 0.0
    %223 = vmatpush1.msra.mxu0 %v197
    %224 = vmatprep.subr.mxu0 0.0
    %225 = vmatpush1.msra.mxu0 %v196
    %226 = vmatprep.subr.mxu0 0.0
    %227 = vmatpush1.msra.mxu0 %v195
    %228 = vmatprep.subr.mxu0 0.0
    %229 = vmatpush1.msra.mxu0 %v194
    %230 = vmatprep.subr.mxu0 0.0
    %231 = vmatpush2.msra.mxu0 0.0
    %232 = vmatprep.subr.mxu0 0.0
    %233 = vmatpush2.msra.mxu0 0.0
    %234 = vmatprep.subr.mxu0 0.0
    %235 = vmatpush2.msra.mxu0 0.0
    %236 = vmatprep.subr.mxu0 0.0
    %237 = vmatpush2.msra.mxu0 0.0
    %238 = vmatprep.subr.mxu0 0.0
    %239 = vmatpush2.msra.mxu0 0.0
    %240 = vmatprep.subr.mxu0 0.0
    %241 = vmatpush2.msra.mxu0 0.0
    %242 = vmatprep.subr.mxu0 0.0
    %243 = vmatpush2.msra.mxu0 0.0
    %244 = vmatprep.subr.mxu0 0.0
    %245 = vmatpush2.msra.mxu0 0.0
    %246 = vmatprep.subr.mxu0 0.0
    %247 = vmatpush2.msra.mxu0 0.0
    %248 = vmatprep.subr.mxu0 0.0
    %249 = vmatpush2.msra.mxu0 0.0
    %250 = vmatprep.subr.mxu0 0.0
    %251 = vmatpush2.msra.mxu0 0.0
    %252 = vmatprep.subr.mxu0 0.0
    %253 = vmatpush2.msra.mxu0 0.0
    %254 = vmatprep.subr.mxu0 0.0
    %255 = vmatpush2.msra.mxu0 0.0
    %256 = vmatprep.subr.mxu0 0.0
    %257 = vmatpush2.msra.mxu0 0.0
    %258 = vmatprep.subr.mxu0 0.0
    %259 = vmatpush2.msra.mxu0 0.0
    %260 = vmatprep.subr.mxu0 0.0
    %261 = vmatpush2.msra.mxu0 0.0
    %262 = vmatprep.mubr.f32.mxu0 0.0
    %263 = vmatmul.mubr.f32.gmra.mxu0 %v30
    %v264 = vpop.f32.mrf.mxu0
    %v265 = vadd.f32 0.0, %v264
    %v266 = vpop.f32.mrf.mxu0
    %267 = vmatprep.mubr.f32.mxu0 0.0
    %268 = vmatmul.mubr.f32.gmra.mxu0 %v33
    %v269 = vpop.f32.mrf.mxu0
    %v270 = vadd.f32 0.0, %v269
    %v271 = vpop.f32.mrf.mxu0
    %272 = vdwg.mxu0
    %273 = vst.msk [vmem:[#allocation6] sm:$0xff] %vm110, %v265
    %274 = vst.msk [vmem:[#allocation6 + $0x8] sm:$0xff] %vm110, %v270
    // Predicated region
    $region18: #{tpu_custom_call.1} parent=1 // pred_check
      _
    $region19: #{tpu_custom_call.1} parent=1 // pred_check_branch
      %276 = sbr.rel (0) target = $region21
    $region20: #{tpu_custom_call.1} parent=1 // pred_region
      %s278 = ssub.s32 256, 256
      %279 = vsyncadd [#allocation3], %s278
      %s280 = sshll.u32 [#allocation2], 4
      %s281 = int_to_ptr.vmem [resolvable:$true] %s280
      %286 = dma.vmem_to_hbm [thread:$0]  %s281, 256, %s4, [#allocation3], 128, 128, 8
    $region21: #{tpu_custom_call.1} parent=1 // pred_fallthru
      _
    // Predicated region
    $region22: #{tpu_custom_call.1} parent=1 // pred_check
      _
    $region23: #{tpu_custom_call.1} parent=1 // pred_check_branch
      %288 = sbr.rel (0) target = $region25
    $region24: #{tpu_custom_call.1} parent=1 // pred_region
      %s290 = ssub.s32 256, 256
      %291 = vsyncadd [#allocation5], %s290
      %s292 = sshll.u32 [#allocation4], 4
      %s293 = int_to_ptr.vmem [resolvable:$true] %s292
      %298 = dma.vmem_to_hbm [thread:$0]  %s293, 256, %s5, [#allocation5], 128, 128, 8
    $region25: #{tpu_custom_call.1} parent=1 // pred_fallthru
      _
    // Predicated region
    $region26: #{tpu_custom_call.1} parent=1 // pred_check
      _
    $region27: #{tpu_custom_call.1} parent=1 // pred_check_branch
      %300 = sbr.rel (0) target = $region29
    $region28: #{tpu_custom_call.1} parent=1 // pred_region
      %s302 = ssub.s32 256, 256
      %303 = vsyncadd [#allocation5], %s302
      %s304 = sshll.u32 [#allocation6], 4
      %s305 = int_to_ptr.vmem [resolvable:$true] %s304
      %310 = dma.vmem_to_hbm [thread:$0]  %s305, 256, %s6, [#allocation5], 128, 128, 8
    $region29: #{tpu_custom_call.1} parent=1 // pred_fallthru
      _
    // Predicated region
    $region30: #{tpu_custom_call.1} parent=1 // pred_check
      _
    $region31: #{tpu_custom_call.1} parent=1 // pred_check_branch
      %312 = sbr.rel (0) target = $region33
    $region32: #{tpu_custom_call.1} parent=1 // pred_region
      %313 = dma.done [#allocation3], 256
    $region33: #{tpu_custom_call.1} parent=1 // pred_fallthru
      _
    // Predicated region
    $region34: #{tpu_custom_call.1} parent=1 // pred_check
      _
    $region35: #{tpu_custom_call.1} parent=1 // pred_check_branch
      %315 = sbr.rel (0) target = $region37
    $region36: #{tpu_custom_call.1} parent=1 // pred_region
      %316 = dma.done [#allocation5], 256
    $region37: #{tpu_custom_call.1} parent=1 // pred_fallthru
      _
    // Predicated region
    $region38: #{tpu_custom_call.1} parent=1 // pred_check
      _
    $region39: #{tpu_custom_call.1} parent=1 // pred_check_branch
      %318 = sbr.rel (0) target = $region41
    $region40: #{tpu_custom_call.1} parent=1 // pred_region
      %319 = dma.done [#allocation5], 256
    $region41: #{tpu_custom_call.1} parent=1 // pred_fallthru
      _
    %320 = vsyncpa [#allocation3], 1
    %321 = vsyncpa [#allocation5], 1

</llo_original>
